<compile_context>
chip_gen: v5e
topology: v5e:2x2
jax: 0.10.0
libtpu: 0.0.40
codegen_flags: <defaults>
</compile_context>

<pallas_src>
import functools

import jax
import jax.numpy as jnp
from jax import lax
from jax.experimental import pallas as pl
from jax.experimental.pallas import tpu as pltpu

C_OUT = 32          # channels per branch
N_BR = 3            # branches
C_REAL = N_BR * C_OUT       # 96 real channels
C_PAD = 128                 # lane-padded channel width
N_REAL = 64                 # real output features
N_PAD = 128                 # lane-padded output width
BN_EPS = 1e-5
PAD = 3                     # max kernel half-width (k=7)
TAPS = 2 * PAD + 1          # 7 fused taps
ROW_SHIFT = 7               # row of folded BN shift in the misc slab
ROW_BIAS = 8                # row of fc_b + res_b in the misc slab


def _geometry(L):
    """Shared shape bookkeeping for wrapper and packer (keeps them in sync)."""
    Lp = L + 2 * PAD                     # padded length
    half = (Lp + 1) // 2                 # even-ized half length
    h = L // 2                           # pooled length (floor, like MaxPool1d)
    W = 128 * pl.cdiv(2 * half, 128)     # lane-padded packed-input width
    return Lp, half, h, W


def _cnn_kernel(xeo_ref, cm_ref, wfc_ref, wres_ref, out_ref, *, half, h):
    """One batch tile.

    xeo_ref:  (TB, W)    even/odd packed, padded input rows:
                         cols [0, half) = padded-x even positions,
                         cols [half, 2*half) = odd positions, rest zero.
    cm_ref:   (16, 128)  rows 0..6 = conv taps with BN scale folded in,
                         row 7 = folded BN shift, row 8 = fc_b + res_b.
    wfc_ref:  (128, 128) fc weight (divided by h) on the pooled sum.
    wres_ref: (W, 128)   residual weight permuted to the packed-x layout
                         (zero rows at pad positions).
    out_ref:  (TB, 128)  columns 64..127 are zero padding.
    """
    cm = cm_ref[...]                                     # (16, 128)

    # Fused 3-branch Conv1d evaluated directly at pooling-even / pooling-odd
    # output positions.  Segment s = (output parity + tap) is shared by two
    # taps, so only 8 contiguous half-length slices are ever loaded, and at
    # most one is live at a time.
    acc_e = None
    acc_o = None
    for s in range(TAPS + 1):
        base = (s % 2) * half + s // 2
        seg = xeo_ref[:, base:base + h][:, :, None]      # (TB, h, 1)
        if s < TAPS:                                     # even outputs, tap s
            t = seg * cm[s]
            acc_e = t if acc_e is None else acc_e + t
        if s > 0:                                        # odd outputs, tap s-1
            t = seg * cm[s - 1]
            acc_o = t if acc_o is None else acc_o + t

    # MaxPool1d(2) + BN shift + ReLU in one pass (scale already in the taps),
    # then the mean's sum (1/h is folded into wfc).
    z = jnp.maximum(jnp.maximum(acc_e, acc_o) + cm[ROW_SHIFT], 0.0)   # (TB,h,128)
    pooled = jnp.sum(z, axis=1)                                       # (TB, 128)

    # Dropout(0.3): eval-mode identity.
    # fc(combined) + residual(x) + (fc_b + res_b): two lane-dense MXU matmuls.
    out = (jnp.dot(pooled, wfc_ref[...], preferred_element_type=jnp.float32)
           + jnp.dot(xeo_ref[...], wres_ref[...], preferred_element_type=jnp.float32)
           + cm[ROW_BIAS])
    out_ref[...] = out.astype(out_ref.dtype)


def _pick_batch_tile(B, h, W):
    """VMEM- and TensorCore-aware batch tile."""
    # ~4 live (TB, h, 128)-footprint f32 intermediates + double-buffered IO rows.
    per_row = 4 * h * 128 * 4 + 2 * 4 * W + 2 * 4 * N_PAD
    fixed = 2 * 4 * (16 * 128 + 128 * 128 + W * 128)      # weight slabs (2 buffers)
    budget = 20 * 1024 * 1024                             # safe under 32 MiB scoped
    cap = max(8, (budget - fixed) // max(per_row, 1))
    tb = min(128, cap)
    if B >= 16:
        # Keep at least 2 grid steps so multi-TC chips (v7x) shard the batch.
        tb = min(tb, 8 * pl.cdiv(pl.cdiv(B, 2), 8))
    tb = max(8, (tb // 8) * 8)
    n_tiles = pl.cdiv(B, tb)
    # Rebalance so a batch just above a tile boundary doesn't pad an almost
    # empty extra tile.
    tb = 8 * pl.cdiv(pl.cdiv(B, n_tiles), 8)
    return tb, tb * n_tiles


def cnn_feature_extractor2(x, params):
    """x: (B, L) float32.  Returns (B, 64) float32."""
    B, L = x.shape
    assert L >= 2, "CNNFeatureExtractor2 kernel requires input_dim >= 2"
    assert int(params["input_dim"]) == L, (
        "packed params were built for a different input_dim")
    Lp, half, h, W = _geometry(L)

    # Pad length once (PAD left, PAD(+1) right to an even total), then pack
    # the even / odd positions side by side and pad the width to W lanes.
    xp = jnp.pad(x, ((0, 0), (PAD, 2 * half - L - PAD)))          # (B, 2*half)
    xeo = jnp.concatenate([xp[:, 0::2], xp[:, 1::2]], axis=1)     # (B, 2*half)
    if W > 2 * half:
        xeo = jnp.pad(xeo, ((0, 0), (0, W - 2 * half)))

    TB, B_pad = _pick_batch_tile(B, h, W)
    if B_pad != B:
        xeo = jnp.pad(xeo, ((0, B_pad - B), (0, 0)))

    cm = params["cm"]            # (16, 128)
    wfc = params["wfc"]          # (128, 128)
    wres = params["wres"]        # (W, 128)

    kernel = functools.partial(_cnn_kernel, half=half, h=h)
    out = pl.pallas_call(
        kernel,
        out_shape=jax.ShapeDtypeStruct((B_pad, N_PAD), jnp.float32),
        grid=(B_pad // TB,),
        in_specs=[
            pl.BlockSpec((TB, W), lambda i: (i, 0)),
            pl.BlockSpec(cm.shape, lambda i: (0, 0)),
            pl.BlockSpec(wfc.shape, lambda i: (0, 0)),
            pl.BlockSpec(wres.shape, lambda i: (0, 0)),
        ],
        out_specs=pl.BlockSpec((TB, N_PAD), lambda i: (i, 0)),
        compiler_params=pltpu.CompilerParams(
            dimension_semantics=("parallel",),
            # TB selection keeps the working set well below this; on v5e/v6e
            # (128 MiB physical) this could be raised and TB kept at 128.
            vmem_limit_bytes=32 * 1024 * 1024,
        ),
    )(xeo, cm, wfc, wres)
    return out[:B, :N_REAL]


def pack_params(raw, input_dim):
    """Fold BN (scale into taps), 1/h into fc, permute residual to the packed
    even/odd layout, and lane-pad everything to 128."""
    L = input_dim
    assert L >= 2, "CNNFeatureExtractor2 kernel requires input_dim >= 2"
    _, half, h, W = _geometry(L)

    def fold(br):
        scale = br["gamma"] / jnp.sqrt(br["var"] + BN_EPS)           # (32,)
        shift = (br["b"] - br["mean"]) * scale + br["beta"]          # (32,)
        return scale, shift

    s1, h1 = fold(raw["br1"])
    s2, h2 = fold(raw["br2"])
    s3, h3 = fold(raw["br3"])
    scale = jnp.concatenate([s1, s2, s3])                            # (96,)
    shift = jnp.concatenate([h1, h2, h3])                            # (96,)

    # Fused conv taps: branch with kernel k, pad p=k//2 occupies rows 3-p..3+p.
    taps = jnp.zeros((TAPS, C_REAL), jnp.float32)
    taps = taps.at[2:5, 0:32].set(raw["br1"]["w"][:, 0, :].T)        # k=3
    taps = taps.at[1:6, 32:64].set(raw["br2"]["w"][:, 0, :].T)       # k=5
    taps = taps.at[0:7, 64:96].set(raw["br3"]["w"][:, 0, :].T)       # k=7

    cm = jnp.zeros((16, C_PAD), jnp.float32)
    cm = cm.at[:TAPS, :C_REAL].set(taps * scale[None, :])            # BN scale folded
    cm = cm.at[ROW_SHIFT, :C_REAL].set(shift)
    cm = cm.at[ROW_BIAS, :N_REAL].set(raw["fc_b"] + raw["res_b"])

    wfc = jnp.zeros((C_PAD, N_PAD), jnp.float32)
    wfc = wfc.at[:C_REAL, :N_REAL].set(raw["fc_w"].T / h)            # mean folded

    # Residual weight permuted to the packed even/odd column order.
    q = jnp.arange(L) + PAD                                          # padded positions
    col = q // 2 + (q % 2) * half                                    # packed columns
    wres_core = jnp.zeros((2 * half, N_REAL), jnp.float32).at[col].set(raw["res_w"].T)
    wres = jnp.zeros((W, N_PAD), jnp.float32)
    wres = wres.at[:2 * half, :N_REAL].set(wres_core)

    return dict(cm=cm, wfc=wfc, wres=wres, input_dim=L)


def make_params(key, input_dim):
    """Deterministic parameter init matching the module's __init__ shapes."""
    ks = jax.random.split(key, 22)
    it = iter(ks)

    def nxt():
        return next(it)

    def conv_branch(k):
        w = jax.random.normal(nxt(), (C_OUT, 1, k), jnp.float32) * 0.2
        b = jax.random.normal(nxt(), (C_OUT,), jnp.float32) * 0.1
        gamma = 1.0 + 0.1 * jax.random.normal(nxt(), (C_OUT,), jnp.float32)
        beta = 0.1 * jax.random.normal(nxt(), (C_OUT,), jnp.float32)
        mean = 0.1 * jax.random.normal(nxt(), (C_OUT,), jnp.float32)
        var = 0.5 + jnp.abs(jax.random.normal(nxt(), (C_OUT,), jnp.float32))
        return dict(w=w, b=b, gamma=gamma, beta=beta, mean=mean, var=var)

    br1, br2, br3 = conv_branch(3), conv_branch(5), conv_branch(7)
    fc_w = jax.random.normal(nxt(), (N_REAL, C_REAL), jnp.float32) * 0.1
    fc_b = jax.random.normal(nxt(), (N_REAL,), jnp.float32) * 0.1
    res_w = jax.random.normal(nxt(), (N_REAL, input_dim), jnp.float32) * 0.1
    res_b = jax.random.normal(nxt(), (N_REAL,), jnp.float32) * 0.1

    raw = dict(br1=br1, br2=br2, br3=br3,
               fc_w=fc_w, fc_b=fc_b, res_w=res_w, res_b=res_b)
    return pack_params(raw, input_dim), raw


def reference(x, raw):
    """Pure-JAX reference mirroring the PyTorch forward (eval mode)."""
    def branch(br, k):
        pad = k // 2
        xp = jnp.pad(x, ((0, 0), (pad, pad)))
        L0 = x.shape[1]
        cols = jnp.stack([xp[:, j:j + L0] for j in range(k)], axis=-1)  # (B,L,k)
        y = jnp.einsum("blk,ck->bcl", cols, br["w"][:, 0, :]) \
            + br["b"][None, :, None]
        y = (y - br["mean"][None, :, None]) \
            / jnp.sqrt(br["var"][None, :, None] + BN_EPS) \
            * br["gamma"][None, :, None] + br["beta"][None, :, None]
        y = jnp.maximum(y, 0.0)
        B, C, L0 = y.shape
        Lf = (L0 // 2) * 2
        y = y[:, :, :Lf].reshape(B, C, L0 // 2, 2).max(axis=-1)
        return y.mean(axis=-1)                                          # (B, C)

    b1 = branch(raw["br1"], 3)
    b2 = branch(raw["br2"], 5)
    b3 = branch(raw["br3"], 7)
    combined = jnp.concatenate([b1, b2, b3], axis=1)
    fc = combined @ raw["fc_w"].T + raw["fc_b"]
    res = x @ raw["res_w"].T + raw["res_b"]
    return fc + res


if __name__ == "__main__":
    key = jax.random.PRNGKey(0)
    k_x, k_p, k_x2, k_p2 = jax.random.split(key, 4)

    # Primary small-shape test: batch=2, input_dim=16.
    B, INPUT_DIM = 2, 16
    x = jax.random.normal(k_x, (B, INPUT_DIM), jnp.float32)
    packed, raw = make_params(k_p, INPUT_DIM)
    out = jax.block_until_ready(cnn_feature_extractor2(x, packed))
    ref = reference(x, raw)
    assert out.shape == (B, 64)
    assert jnp.allclose(out, ref, rtol=1e-4, atol=1e-4), (
        float(jnp.max(jnp.abs(out - ref))))

    # Secondary test: odd length (MaxPool1d floor semantics) + batch padding.
    B2, DIM2 = 5, 15
    x2 = jax.random.normal(k_x2, (B2, DIM2), jnp.float32)
    packed2, raw2 = make_params(k_p2, DIM2)
    out2 = jax.block_until_ready(cnn_feature_extractor2(x2, packed2))
    ref2 = reference(x2, raw2)
    assert out2.shape == (B2, 64)
    assert jnp.allclose(out2, ref2, rtol=1e-4, atol=1e-4), (
        float(jnp.max(jnp.abs(out2 - ref2))))

    print("KERNEL_OK")
</pallas_src>

<mosaic_0001>
module attributes {stable_mosaic.version = 11 : i64} {
  func.func @_cnn_kernel(%arg0: i32, %arg1: memref<8x128xf32, #tpu.memory_space<vmem>>, %arg2: memref<16x128xf32, #tpu.memory_space<vmem>>, %arg3: memref<128x128xf32, #tpu.memory_space<vmem>>, %arg4: memref<128x128xf32, #tpu.memory_space<vmem>>, %arg5: memref<8x128xf32, #tpu.memory_space<vmem>>) attributes {dimension_semantics = [#tpu.dimension_semantics<parallel>], iteration_bounds = array<i64: 1>, scalar_prefetch = 0 : i64, scratch_operands = 0 : i64, tpu.core_type = #tpu.core_type<tc>, window_params = [{transform_indices = @transform_0, window_bounds = array<i64: 8, 128>}, {pipeline_mode = #tpu.pipeline_mode<synchronous>, transform_indices = @transform_1, window_bounds = array<i64: 16, 128>}, {pipeline_mode = #tpu.pipeline_mode<synchronous>, transform_indices = @transform_2, window_bounds = array<i64: 128, 128>}, {pipeline_mode = #tpu.pipeline_mode<synchronous>, transform_indices = @transform_3, window_bounds = array<i64: 128, 128>}, {transform_indices = @transform_4, window_bounds = array<i64: 8, 128>}]} {
    %c0 = arith.constant 0 : index
    %c0_0 = arith.constant 0 : index
    %0 = vector.load %arg2[%c0, %c0_0] : memref<16x128xf32, #tpu.memory_space<vmem>>, vector<16x128xf32>
    %c0_1 = arith.constant 0 : index
    %c0_2 = arith.constant 0 : index
    %1 = vector.load %arg1[%c0_1, %c0_2] : memref<8x128xf32, #tpu.memory_space<vmem>>, vector<8x8xf32>
    %2 = vector.shape_cast %1 : vector<8x8xf32> to vector<8x8x1xf32>
    %3 = vector.extract_strided_slice %0 {offsets = [0, 0], sizes = [1, 128], strides = [1, 1]} : vector<16x128xf32> to vector<1x128xf32>
    %4 = vector.shape_cast %3 : vector<1x128xf32> to vector<128xf32>
    %5 = vector.shape_cast %4 : vector<128xf32> to vector<1x1x128xf32>
    %6 = vector.broadcast %2 : vector<8x8x1xf32> to vector<8x8x128xf32>
    %7 = vector.broadcast %5 : vector<1x1x128xf32> to vector<8x8x128xf32>
    %8 = arith.mulf %6, %7 : vector<8x8x128xf32>
    %c0_3 = arith.constant 0 : index
    %c11 = arith.constant 11 : index
    %9 = vector.load %arg1[%c0_3, %c11] : memref<8x128xf32, #tpu.memory_space<vmem>>, vector<8x8xf32>
    %10 = vector.shape_cast %9 : vector<8x8xf32> to vector<8x8x1xf32>
    %11 = vector.extract_strided_slice %0 {offsets = [1, 0], sizes = [1, 128], strides = [1, 1]} : vector<16x128xf32> to vector<1x128xf32>
    %12 = vector.shape_cast %11 : vector<1x128xf32> to vector<128xf32>
    %13 = vector.shape_cast %12 : vector<128xf32> to vector<1x1x128xf32>
    %14 = vector.broadcast %10 : vector<8x8x1xf32> to vector<8x8x128xf32>
    %15 = vector.broadcast %13 : vector<1x1x128xf32> to vector<8x8x128xf32>
    %16 = arith.mulf %14, %15 : vector<8x8x128xf32>
    %17 = arith.addf %8, %16 : vector<8x8x128xf32>
    %18 = vector.extract_strided_slice %0 {offsets = [0, 0], sizes = [1, 128], strides = [1, 1]} : vector<16x128xf32> to vector<1x128xf32>
    %19 = vector.shape_cast %18 : vector<1x128xf32> to vector<128xf32>
    %20 = vector.shape_cast %19 : vector<128xf32> to vector<1x1x128xf32>
    %21 = vector.broadcast %10 : vector<8x8x1xf32> to vector<8x8x128xf32>
    %22 = vector.broadcast %20 : vector<1x1x128xf32> to vector<8x8x128xf32>
    %23 = arith.mulf %21, %22 : vector<8x8x128xf32>
    %c0_4 = arith.constant 0 : index
    %c1 = arith.constant 1 : index
    %24 = vector.load %arg1[%c0_4, %c1] : memref<8x128xf32, #tpu.memory_space<vmem>>, vector<8x8xf32>
    %25 = vector.shape_cast %24 : vector<8x8xf32> to vector<8x8x1xf32>
    %26 = vector.extract_strided_slice %0 {offsets = [2, 0], sizes = [1, 128], strides = [1, 1]} : vector<16x128xf32> to vector<1x128xf32>
    %27 = vector.shape_cast %26 : vector<1x128xf32> to vector<128xf32>
    %28 = vector.shape_cast %27 : vector<128xf32> to vector<1x1x128xf32>
    %29 = vector.broadcast %25 : vector<8x8x1xf32> to vector<8x8x128xf32>
    %30 = vector.broadcast %28 : vector<1x1x128xf32> to vector<8x8x128xf32>
    %31 = arith.mulf %29, %30 : vector<8x8x128xf32>
    %32 = arith.addf %17, %31 : vector<8x8x128xf32>
    %33 = vector.extract_strided_slice %0 {offsets = [1, 0], sizes = [1, 128], strides = [1, 1]} : vector<16x128xf32> to vector<1x128xf32>
    %34 = vector.shape_cast %33 : vector<1x128xf32> to vector<128xf32>
    %35 = vector.shape_cast %34 : vector<128xf32> to vector<1x1x128xf32>
    %36 = vector.broadcast %25 : vector<8x8x1xf32> to vector<8x8x128xf32>
    %37 = vector.broadcast %35 : vector<1x1x128xf32> to vector<8x8x128xf32>
    %38 = arith.mulf %36, %37 : vector<8x8x128xf32>
    %39 = arith.addf %23, %38 : vector<8x8x128xf32>
    %c0_5 = arith.constant 0 : index
    %c12 = arith.constant 12 : index
    %40 = vector.load %arg1[%c0_5, %c12] : memref<8x128xf32, #tpu.memory_space<vmem>>, vector<8x8xf32>
    %41 = vector.shape_cast %40 : vector<8x8xf32> to vector<8x8x1xf32>
    %42 = vector.extract_strided_slice %0 {offsets = [3, 0], sizes = [1, 128], strides = [1, 1]} : vector<16x128xf32> to vector<1x128xf32>
    %43 = vector.shape_cast %42 : vector<1x128xf32> to vector<128xf32>
    %44 = vector.shape_cast %43 : vector<128xf32> to vector<1x1x128xf32>
    %45 = vector.broadcast %41 : vector<8x8x1xf32> to vector<8x8x128xf32>
    %46 = vector.broadcast %44 : vector<1x1x128xf32> to vector<8x8x128xf32>
    %47 = arith.mulf %45, %46 : vector<8x8x128xf32>
    %48 = arith.addf %32, %47 : vector<8x8x128xf32>
    %49 = vector.extract_strided_slice %0 {offsets = [2, 0], sizes = [1, 128], strides = [1, 1]} : vector<16x128xf32> to vector<1x128xf32>
    %50 = vector.shape_cast %49 : vector<1x128xf32> to vector<128xf32>
    %51 = vector.shape_cast %50 : vector<128xf32> to vector<1x1x128xf32>
    %52 = vector.broadcast %41 : vector<8x8x1xf32> to vector<8x8x128xf32>
    %53 = vector.broadcast %51 : vector<1x1x128xf32> to vector<8x8x128xf32>
    %54 = arith.mulf %52, %53 : vector<8x8x128xf32>
    %55 = arith.addf %39, %54 : vector<8x8x128xf32>
    %c0_6 = arith.constant 0 : index
    %c2 = arith.constant 2 : index
    %56 = vector.load %arg1[%c0_6, %c2] : memref<8x128xf32, #tpu.memory_space<vmem>>, vector<8x8xf32>
    %57 = vector.shape_cast %56 : vector<8x8xf32> to vector<8x8x1xf32>
    %58 = vector.extract_strided_slice %0 {offsets = [4, 0], sizes = [1, 128], strides = [1, 1]} : vector<16x128xf32> to vector<1x128xf32>
    %59 = vector.shape_cast %58 : vector<1x128xf32> to vector<128xf32>
    %60 = vector.shape_cast %59 : vector<128xf32> to vector<1x1x128xf32>
    %61 = vector.broadcast %57 : vector<8x8x1xf32> to vector<8x8x128xf32>
    %62 = vector.broadcast %60 : vector<1x1x128xf32> to vector<8x8x128xf32>
    %63 = arith.mulf %61, %62 : vector<8x8x128xf32>
    %64 = arith.addf %48, %63 : vector<8x8x128xf32>
    %65 = vector.extract_strided_slice %0 {offsets = [3, 0], sizes = [1, 128], strides = [1, 1]} : vector<16x128xf32> to vector<1x128xf32>
    %66 = vector.shape_cast %65 : vector<1x128xf32> to vector<128xf32>
    %67 = vector.shape_cast %66 : vector<128xf32> to vector<1x1x128xf32>
    %68 = vector.broadcast %57 : vector<8x8x1xf32> to vector<8x8x128xf32>
    %69 = vector.broadcast %67 : vector<1x1x128xf32> to vector<8x8x128xf32>
    %70 = arith.mulf %68, %69 : vector<8x8x128xf32>
    %71 = arith.addf %55, %70 : vector<8x8x128xf32>
    %c0_7 = arith.constant 0 : index
    %c13 = arith.constant 13 : index
    %72 = vector.load %arg1[%c0_7, %c13] : memref<8x128xf32, #tpu.memory_space<vmem>>, vector<8x8xf32>
    %73 = vector.shape_cast %72 : vector<8x8xf32> to vector<8x8x1xf32>
    %74 = vector.extract_strided_slice %0 {offsets = [5, 0], sizes = [1, 128], strides = [1, 1]} : vector<16x128xf32> to vector<1x128xf32>
    %75 = vector.shape_cast %74 : vector<1x128xf32> to vector<128xf32>
    %76 = vector.shape_cast %75 : vector<128xf32> to vector<1x1x128xf32>
    %77 = vector.broadcast %73 : vector<8x8x1xf32> to vector<8x8x128xf32>
    %78 = vector.broadcast %76 : vector<1x1x128xf32> to vector<8x8x128xf32>
    %79 = arith.mulf %77, %78 : vector<8x8x128xf32>
    %80 = arith.addf %64, %79 : vector<8x8x128xf32>
    %81 = vector.extract_strided_slice %0 {offsets = [4, 0], sizes = [1, 128], strides = [1, 1]} : vector<16x128xf32> to vector<1x128xf32>
    %82 = vector.shape_cast %81 : vector<1x128xf32> to vector<128xf32>
    %83 = vector.shape_cast %82 : vector<128xf32> to vector<1x1x128xf32>
    %84 = vector.broadcast %73 : vector<8x8x1xf32> to vector<8x8x128xf32>
    %85 = vector.broadcast %83 : vector<1x1x128xf32> to vector<8x8x128xf32>
    %86 = arith.mulf %84, %85 : vector<8x8x128xf32>
    %87 = arith.addf %71, %86 : vector<8x8x128xf32>
    %c0_8 = arith.constant 0 : index
    %c3 = arith.constant 3 : index
    %88 = vector.load %arg1[%c0_8, %c3] : memref<8x128xf32, #tpu.memory_space<vmem>>, vector<8x8xf32>
    %89 = vector.shape_cast %88 : vector<8x8xf32> to vector<8x8x1xf32>
    %90 = vector.extract_strided_slice %0 {offsets = [6, 0], sizes = [1, 128], strides = [1, 1]} : vector<16x128xf32> to vector<1x128xf32>
    %91 = vector.shape_cast %90 : vector<1x128xf32> to vector<128xf32>
    %92 = vector.shape_cast %91 : vector<128xf32> to vector<1x1x128xf32>
    %93 = vector.broadcast %89 : vector<8x8x1xf32> to vector<8x8x128xf32>
    %94 = vector.broadcast %92 : vector<1x1x128xf32> to vector<8x8x128xf32>
    %95 = arith.mulf %93, %94 : vector<8x8x128xf32>
    %96 = arith.addf %80, %95 : vector<8x8x128xf32>
    %97 = vector.extract_strided_slice %0 {offsets = [5, 0], sizes = [1, 128], strides = [1, 1]} : vector<16x128xf32> to vector<1x128xf32>
    %98 = vector.shape_cast %97 : vector<1x128xf32> to vector<128xf32>
    %99 = vector.shape_cast %98 : vector<128xf32> to vector<1x1x128xf32>
    %100 = vector.broadcast %89 : vector<8x8x1xf32> to vector<8x8x128xf32>
    %101 = vector.broadcast %99 : vector<1x1x128xf32> to vector<8x8x128xf32>
    %102 = arith.mulf %100, %101 : vector<8x8x128xf32>
    %103 = arith.addf %87, %102 : vector<8x8x128xf32>
    %c0_9 = arith.constant 0 : index
    %c14 = arith.constant 14 : index
    %104 = vector.load %arg1[%c0_9, %c14] : memref<8x128xf32, #tpu.memory_space<vmem>>, vector<8x8xf32>
    %105 = vector.shape_cast %104 : vector<8x8xf32> to vector<8x8x1xf32>
    %106 = vector.extract_strided_slice %0 {offsets = [6, 0], sizes = [1, 128], strides = [1, 1]} : vector<16x128xf32> to vector<1x128xf32>
    %107 = vector.shape_cast %106 : vector<1x128xf32> to vector<128xf32>
    %108 = vector.shape_cast %107 : vector<128xf32> to vector<1x1x128xf32>
    %109 = vector.broadcast %105 : vector<8x8x1xf32> to vector<8x8x128xf32>
    %110 = vector.broadcast %108 : vector<1x1x128xf32> to vector<8x8x128xf32>
    %111 = arith.mulf %109, %110 : vector<8x8x128xf32>
    %112 = arith.addf %103, %111 : vector<8x8x128xf32>
    %113 = arith.maximumf %96, %112 : vector<8x8x128xf32>
    %114 = vector.extract_strided_slice %0 {offsets = [7, 0], sizes = [1, 128], strides = [1, 1]} : vector<16x128xf32> to vector<1x128xf32>
    %115 = vector.shape_cast %114 : vector<1x128xf32> to vector<128xf32>
    %116 = vector.shape_cast %115 : vector<128xf32> to vector<1x1x128xf32>
    %117 = vector.broadcast %116 : vector<1x1x128xf32> to vector<8x8x128xf32>
    %118 = arith.addf %113, %117 : vector<8x8x128xf32>
    %cst = arith.constant 0.000000e+00 : f32
    %119 = vector.broadcast %cst : f32 to vector<8x8x128xf32>
    %120 = arith.maximumf %118, %119 : vector<8x8x128xf32>
    %cst_10 = arith.constant dense<0.000000e+00> : vector<8x128xf32>
    %121 = vector.multi_reduction <add>, %120, %cst_10 [1] : vector<8x8x128xf32> to vector<8x128xf32>
    %c0_11 = arith.constant 0 : index
    %c0_12 = arith.constant 0 : index
    %122 = vector.load %arg3[%c0_11, %c0_12] : memref<128x128xf32, #tpu.memory_space<vmem>>, vector<128x128xf32>
    %cst_13 = arith.constant dense<0.000000e+00> : vector<8x128xf32>
    %123 = tpu.matmul %121, %122, %cst_13 {dimension_numbers = #tpu.dot_dimension_numbers<[1], [0], [0], [1], [0, 0, 1, 1], [], []>} : vector<8x128xf32>, vector<128x128xf32>, vector<8x128xf32> -> vector<8x128xf32>
    %c0_14 = arith.constant 0 : index
    %c0_15 = arith.constant 0 : index
    %124 = vector.load %arg1[%c0_14, %c0_15] : memref<8x128xf32, #tpu.memory_space<vmem>>, vector<8x128xf32>
    %c0_16 = arith.constant 0 : index
    %c0_17 = arith.constant 0 : index
    %125 = vector.load %arg4[%c0_16, %c0_17] : memref<128x128xf32, #tpu.memory_space<vmem>>, vector<128x128xf32>
    %cst_18 = arith.constant dense<0.000000e+00> : vector<8x128xf32>
    %126 = tpu.matmul %124, %125, %cst_18 {dimension_numbers = #tpu.dot_dimension_numbers<[1], [0], [0], [1], [0, 0, 1, 1], [], []>} : vector<8x128xf32>, vector<128x128xf32>, vector<8x128xf32> -> vector<8x128xf32>
    %127 = arith.addf %123, %126 : vector<8x128xf32>
    %128 = vector.extract_strided_slice %0 {offsets = [8, 0], sizes = [1, 128], strides = [1, 1]} : vector<16x128xf32> to vector<1x128xf32>
    %129 = vector.shape_cast %128 : vector<1x128xf32> to vector<128xf32>
    %130 = vector.shape_cast %129 : vector<128xf32> to vector<1x128xf32>
    %131 = vector.broadcast %130 : vector<1x128xf32> to vector<8x128xf32>
    %132 = arith.addf %127, %131 : vector<8x128xf32>
    %c0_19 = arith.constant 0 : index
    %c0_20 = arith.constant 0 : index
    %133 = vector.load %arg5[%c0_19, %c0_20] : memref<8x128xf32, #tpu.memory_space<vmem>>, vector<8x128xf32>
    tpu.vector_store %arg5[%c0_19, %c0_20], %132 {strides = array<i32>} : memref<8x128xf32, #tpu.memory_space<vmem>>, vector<8x128xf32>,
    return
  }
  func.func @transform_0(%arg0: i32) -> (i32, i32) {
    %c0_i32 = arith.constant 0 : i32
    %c0_i32_0 = arith.constant 0 : i32
    return %arg0, %c0_i32 : i32, i32
  }
  func.func @transform_1(%arg0: i32) -> (i32, i32) {
    %c0_i32 = arith.constant 0 : i32
    %c0_i32_0 = arith.constant 0 : i32
    %c0_i32_1 = arith.constant 0 : i32
    return %c0_i32, %c0_i32_0 : i32, i32
  }
  func.func @transform_2(%arg0: i32) -> (i32, i32) {
    %c0_i32 = arith.constant 0 : i32
    %c0_i32_0 = arith.constant 0 : i32
    %c0_i32_1 = arith.constant 0 : i32
    return %c0_i32, %c0_i32_0 : i32, i32
  }
  func.func @transform_3(%arg0: i32) -> (i32, i32) {
    %c0_i32 = arith.constant 0 : i32
    %c0_i32_0 = arith.constant 0 : i32
    %c0_i32_1 = arith.constant 0 : i32
    return %c0_i32, %c0_i32_0 : i32, i32
  }
  func.func @transform_4(%arg0: i32) -> (i32, i32) {
    %c0_i32 = arith.constant 0 : i32
    %c0_i32_0 = arith.constant 0 : i32
    return %arg0, %c0_i32 : i32, i32
  }
}

</mosaic_0001>

<llo_original>
// kernel: tpu_custom_call.1
$region0: #{tpu_custom_call.1}
  #allocation0 [shape = 'u32[]', space=smem, size = 0x4, offset = 0x4, fixed_abs, tag = 'smem constant byte address 0x4 - core index']
  #allocation1 [shape = 'u32[72,128]{1,0:T(1,128)}', space=vmem, size = 0x9000, scoped, tag = 'internal scratch']
  %s0 = inlined_call_operand.hbm [shape: f32[8,128], index: 0, kind: input, shape index: {}]
  %s1 = inlined_call_operand.hbm [shape: f32[16,128], index: 1, kind: input, shape index: {}]
  %s2 = inlined_call_operand.hbm [shape: f32[128,128], index: 2, kind: input, shape index: {}]
  %s3 = inlined_call_operand.hbm [shape: f32[128,128], index: 3, kind: input, shape index: {}]
  %s4 = inlined_call_operand.hbm [shape: f32[8,128], index: 4, kind: output, shape index: {}]
  %s5 = sld [smem:[#allocation0]]
  $region42: #{tpu_custom_call.1} parent=0
    _
  %s7 = ssub.s32 1, %s5
  %s8 = scalar_select 0, %s7, %s5
  $region1: #{tpu_custom_call.1} parent=0
    #allocation2 [shape = 'u8[4096]{0}', space=vmem, size = 0x1000, scoped, tag = 'input window, operand 0, single buffered']
    #allocation3 [shape = 's32[1]{0}', space=sflag, size = 0x4, scoped, tag = 'scoped memory for tpu_custom_call.1']
    #allocation4 [shape = 's32[1]{0}', space=sflag, size = 0x4, scoped, tag = 'scoped memory for tpu_custom_call.1']
    #allocation5 [shape = 'u8[8192]{0}', space=vmem, size = 0x2000, scoped, tag = 'input window, operand 1, single buffered']
    #allocation6 [shape = 's32[1]{0}', space=sflag, size = 0x4, scoped, tag = 'scoped memory for tpu_custom_call.1']
    #allocation7 [shape = 'u8[65536]{0}', space=vmem, size = 0x10000, scoped, tag = 'input window, operand 2, single buffered']
    #allocation8 [shape = 'u8[65536]{0}', space=vmem, size = 0x10000, scoped, tag = 'input window, operand 3, single buffered']
    #allocation9 [shape = 's32[1]{0}', space=sflag, size = 0x4, scoped, tag = 'scoped memory for tpu_custom_call.1']
    #allocation10 [shape = 'u8[4096]{0}', space=vmem, size = 0x1000, scoped, tag = 'output window, operand 0, single buffered']
    %9 = vsyncpa [#allocation3], 0
    %10 = vsyncpa [#allocation6], 0
    %11 = vsyncpa [#allocation9], 0
    %12 = vsyncpa [#allocation4], 0
    // Predicated region
    $region2: #{tpu_custom_call.1} parent=1 // pred_check
      _
    $region3: #{tpu_custom_call.1} parent=1 // pred_check_branch
      %14 = sbr.rel (0) target = $region5
    $region4: #{tpu_custom_call.1} parent=1 // pred_region
      %16 = vsyncadd [#allocation3], 0
      %s18 = sshll.u32 %s0, 4
      %s19 = int_to_ptr.hbm [resolvable:$true] %s18
      %s20 = sshll.u32 [#allocation2], 4
      %s21 = int_to_ptr.vmem [resolvable:$true] %s20
      %23 = dma.hbm_to_vmem [thread:$0]  %s19, 128, %s21, [#allocation3]
    $region5: #{tpu_custom_call.1} parent=1 // pred_fallthru
      _
    // Predicated region
    $region6: #{tpu_custom_call.1} parent=1 // pred_check
      _
    $region7: #{tpu_custom_call.1} parent=1 // pred_check_branch
      %25 = sbr.rel (0) target = $region9
    $region8: #{tpu_custom_call.1} parent=1 // pred_region
      %27 = vsyncadd [#allocation6], 0
      %s28 = sshll.u32 %s1, 4
      %s29 = int_to_ptr.hbm [resolvable:$true] %s28
      %s30 = sshll.u32 [#allocation5], 4
      %s31 = int_to_ptr.vmem [resolvable:$true] %s30
      %36 = dma.hbm_to_vmem [thread:$0]  %s29, 256, %s31, [#allocation6], 128, 128, 8
    $region9: #{tpu_custom_call.1} parent=1 // pred_fallthru
      _
    // Predicated region
    $region10: #{tpu_custom_call.1} parent=1 // pred_check
      _
    $region11: #{tpu_custom_call.1} parent=1 // pred_check_branch
      %38 = sbr.rel (0) target = $region13
    $region12: #{tpu_custom_call.1} parent=1 // pred_region
      %40 = vsyncadd [#allocation6], 0
      %s41 = sshll.u32 %s2, 4
      %s42 = int_to_ptr.hbm [resolvable:$true] %s41
      %s43 = sshll.u32 [#allocation7], 4
      %s44 = int_to_ptr.vmem [resolvable:$true] %s43
      %49 = dma.hbm_to_vmem [thread:$0]  %s42, 2048, %s44, [#allocation6], 128, 128, 8
    $region13: #{tpu_custom_call.1} parent=1 // pred_fallthru
      _
    // Predicated region
    $region14: #{tpu_custom_call.1} parent=1 // pred_check
      _
    $region15: #{tpu_custom_call.1} parent=1 // pred_check_branch
      %51 = sbr.rel (0) target = $region17
    $region16: #{tpu_custom_call.1} parent=1 // pred_region
      %53 = vsyncadd [#allocation9], 0
      %s54 = sshll.u32 %s3, 4
      %s55 = int_to_ptr.hbm [resolvable:$true] %s54
      %s56 = sshll.u32 [#allocation8], 4
      %s57 = int_to_ptr.vmem [resolvable:$true] %s56
      %62 = dma.hbm_to_vmem [thread:$0]  %s55, 2048, %s57, [#allocation9], 128, 128, 8
    $region17: #{tpu_custom_call.1} parent=1 // pred_fallthru
      _
    // Predicated region
    $region18: #{tpu_custom_call.1} parent=1 // pred_check
      _
    $region19: #{tpu_custom_call.1} parent=1 // pred_check_branch
      %64 = sbr.rel (0) target = $region21
    $region20: #{tpu_custom_call.1} parent=1 // pred_region
      %66 = dma.done [#allocation3], 128
    $region21: #{tpu_custom_call.1} parent=1 // pred_fallthru
      _
    // Predicated region
    $region22: #{tpu_custom_call.1} parent=1 // pred_check
      _
    $region23: #{tpu_custom_call.1} parent=1 // pred_check_branch
      %68 = sbr.rel (0) target = $region25
    $region24: #{tpu_custom_call.1} parent=1 // pred_region
      %70 = dma.done [#allocation6], 256
    $region25: #{tpu_custom_call.1} parent=1 // pred_fallthru
      _
    // Predicated region
    $region26: #{tpu_custom_call.1} parent=1 // pred_check
      _
    $region27: #{tpu_custom_call.1} parent=1 // pred_check_branch
      %72 = sbr.rel (0) target = $region29
    $region28: #{tpu_custom_call.1} parent=1 // pred_region
      %74 = dma.done [#allocation6], 2048
    $region29: #{tpu_custom_call.1} parent=1 // pred_fallthru
      _
    // Predicated region
    $region30: #{tpu_custom_call.1} parent=1 // pred_check
      _
    $region31: #{tpu_custom_call.1} parent=1 // pred_check_branch
      %76 = sbr.rel (0) target = $region33
    $region32: #{tpu_custom_call.1} parent=1 // pred_region
      %78 = dma.done [#allocation9], 2048
    $region33: #{tpu_custom_call.1} parent=1 // pred_fallthru
      _
    %v79 = vld [vmem:[#allocation5] sm:$0xff]
    %v80 = vld [vmem:[#allocation5 + $0x8] sm:$0xff]
    %v81 = vld [vmem:[#allocation2] sm:$0xff]
    %v82 = vperm.slane %v81, 0
    %v83 = vlaneseq
    %v84 = vshrl.u32 %v83, 7
    %86 = vset.pattern.permute.xlu0 %v84
    %87 = vperm.xlu0 %86, %v82
    %v88 = vpop.permute.xlu0 %87
    %v89 = vperm.slane %v81, 1
    %v90 = vlaneseq
    %v91 = vshrl.u32 %v90, 7
    %93 = vset.pattern.permute.xlu0 %v91
    %94 = vperm.xlu0 %93, %v89
    %v95 = vpop.permute.xlu0 %94
    %v96 = vperm.slane %v81, 2
    %v97 = vlaneseq
    %v98 = vshrl.u32 %v97, 7
    %100 = vset.pattern.permute.xlu0 %v98
    %101 = vperm.xlu0 %100, %v96
    %v102 = vpop.permute.xlu0 %101
    %v103 = vperm.slane %v81, 3
    %v104 = vlaneseq
    %v105 = vshrl.u32 %v104, 7
    %107 = vset.pattern.permute.xlu0 %v105
    %108 = vperm.xlu0 %107, %v103
    %v109 = vpop.permute.xlu0 %108
    %v110 = vperm.slane %v81, 4
    %v111 = vlaneseq
    %v112 = vshrl.u32 %v111, 7
    %114 = vset.pattern.permute.xlu0 %v112
    %115 = vperm.xlu0 %114, %v110
    %v116 = vpop.permute.xlu0 %115
    %v117 = vperm.slane %v81, 5
    %v118 = vlaneseq
    %v119 = vshrl.u32 %v118, 7
    %121 = vset.pattern.permute.xlu0 %v119
    %122 = vperm.xlu0 %121, %v117
    %v123 = vpop.permute.xlu0 %122
    %v124 = vperm.slane %v81, 6
    %v125 = vlaneseq
    %v126 = vshrl.u32 %v125, 7
    %128 = vset.pattern.permute.xlu0 %v126
    %129 = vperm.xlu0 %128, %v124
    %v130 = vpop.permute.xlu0 %129
    %v131 = vperm.slane %v81, 7
    %v132 = vlaneseq
    %v133 = vshrl.u32 %v132, 7
    %135 = vset.pattern.permute.xlu0 %v133
    %136 = vperm.xlu0 %135, %v131
    %v137 = vpop.permute.xlu0 %136
    %v138 = vperm.slane %v79, 0
    %v139 = vmul.f32 %v88, %v138
    %v140 = vmul.f32 %v95, %v138
    %v141 = vmul.f32 %v102, %v138
    %v142 = vmul.f32 %v109, %v138
    %v143 = vmul.f32 %v116, %v138
    %v144 = vmul.f32 %v123, %v138
    %v145 = vmul.f32 %v130, %v138
    %v146 = vmul.f32 %v137, %v138
    %v147 = vlaneseq
    %v148 = vshrl.u32 %v147, 7
    %v149 = vadd.s32 %v148, 11
    %150 = vset.pattern.permute.xlu0 %v149
    %151 = vperm.xlu0 %150, %v82
    %v152 = vpop.permute.xlu0 %151
    %v153 = vlaneseq
    %v154 = vshrl.u32 %v153, 7
    %v155 = vadd.s32 %v154, 11
    %156 = vset.pattern.permute.xlu0 %v155
    %157 = vperm.xlu0 %156, %v89
    %v158 = vpop.permute.xlu0 %157
    %v159 = vlaneseq
    %v160 = vshrl.u32 %v159, 7
    %v161 = vadd.s32 %v160, 11
    %162 = vset.pattern.permute.xlu0 %v161
    %163 = vperm.xlu0 %162, %v96
    %v164 = vpop.permute.xlu0 %163
    %v165 = vlaneseq
    %v166 = vshrl.u32 %v165, 7
    %v167 = vadd.s32 %v166, 11
    %168 = vset.pattern.permute.xlu0 %v167
    %169 = vperm.xlu0 %168, %v103
    %v170 = vpop.permute.xlu0 %169
    %v171 = vlaneseq
    %v172 = vshrl.u32 %v171, 7
    %v173 = vadd.s32 %v172, 11
    %174 = vset.pattern.permute.xlu0 %v173
    %175 = vperm.xlu0 %174, %v110
    %v176 = vpop.permute.xlu0 %175
    %v177 = vlaneseq
    %v178 = vshrl.u32 %v177, 7
    %v179 = vadd.s32 %v178, 11
    %180 = vset.pattern.permute.xlu0 %v179
    %181 = vperm.xlu0 %180, %v117
    %v182 = vpop.permute.xlu0 %181
    %v183 = vlaneseq
    %v184 = vshrl.u32 %v183, 7
    %v185 = vadd.s32 %v184, 11
    %186 = vset.pattern.permute.xlu0 %v185
    %187 = vperm.xlu0 %186, %v124
    %v188 = vpop.permute.xlu0 %187
    %v189 = vlaneseq
    %v190 = vshrl.u32 %v189, 7
    %v191 = vadd.s32 %v190, 11
    %192 = vset.pattern.permute.xlu0 %v191
    %193 = vperm.xlu0 %192, %v131
    %v194 = vpop.permute.xlu0 %193
    %v195 = vperm.slane %v79, 1
    %v196 = vmul.f32 %v152, %v195
    %v197 = vmul.f32 %v158, %v195
    %v198 = vmul.f32 %v164, %v195
    %v199 = vmul.f32 %v170, %v195
    %v200 = vmul.f32 %v176, %v195
    %v201 = vmul.f32 %v182, %v195
    %v202 = vmul.f32 %v188, %v195
    %v203 = vmul.f32 %v194, %v195
    %v204 = vadd.f32 %v139, %v196
    %v205 = vadd.f32 %v140, %v197
    %v206 = vadd.f32 %v141, %v198
    %v207 = vadd.f32 %v142, %v199
    %v208 = vadd.f32 %v143, %v200
    %v209 = vadd.f32 %v144, %v201
    %v210 = vadd.f32 %v145, %v202
    %v211 = vadd.f32 %v146, %v203
    %v212 = vmul.f32 %v152, %v138
    %v213 = vmul.f32 %v158, %v138
    %v214 = vmul.f32 %v164, %v138
    %v215 = vmul.f32 %v170, %v138
    %v216 = vmul.f32 %v176, %v138
    %v217 = vmul.f32 %v182, %v138
    %v218 = vmul.f32 %v188, %v138
    %v219 = vmul.f32 %v194, %v138
    %v220 = vlaneseq
    %v221 = vshrl.u32 %v220, 7
    %v222 = vadd.s32 %v221, 1
    %223 = vset.pattern.permute.xlu0 %v222
    %224 = vperm.xlu0 %223, %v82
    %v225 = vpop.permute.xlu0 %224
    %v226 = vlaneseq
    %v227 = vshrl.u32 %v226, 7
    %v228 = vadd.s32 %v227, 1
    %229 = vset.pattern.permute.xlu0 %v228
    %230 = vperm.xlu0 %229, %v89
    %v231 = vpop.permute.xlu0 %230
    %v232 = vlaneseq
    %v233 = vshrl.u32 %v232, 7
    %v234 = vadd.s32 %v233, 1
    %235 = vset.pattern.permute.xlu0 %v234
    %236 = vperm.xlu0 %235, %v96
    %v237 = vpop.permute.xlu0 %236
    %v238 = vlaneseq
    %v239 = vshrl.u32 %v238, 7
    %v240 = vadd.s32 %v239, 1
    %241 = vset.pattern.permute.xlu0 %v240
    %242 = vperm.xlu0 %241, %v103
    %v243 = vpop.permute.xlu0 %242
    %v244 = vlaneseq
    %v245 = vshrl.u32 %v244, 7
    %v246 = vadd.s32 %v245, 1
    %247 = vset.pattern.permute.xlu0 %v246
    %248 = vperm.xlu0 %247, %v110
    %v249 = vpop.permute.xlu0 %248
    %v250 = vlaneseq
    %v251 = vshrl.u32 %v250, 7
    %v252 = vadd.s32 %v251, 1
    %253 = vset.pattern.permute.xlu0 %v252
    %254 = vperm.xlu0 %253, %v117
    %v255 = vpop.permute.xlu0 %254
    %v256 = vlaneseq
    %v257 = vshrl.u32 %v256, 7
    %v258 = vadd.s32 %v257, 1
    %259 = vset.pattern.permute.xlu0 %v258
    %260 = vperm.xlu0 %259, %v124
    %v261 = vpop.permute.xlu0 %260
    %v262 = vlaneseq
    %v263 = vshrl.u32 %v262, 7
    %v264 = vadd.s32 %v263, 1
    %265 = vset.pattern.permute.xlu0 %v264
    %266 = vperm.xlu0 %265, %v131
    %v267 = vpop.permute.xlu0 %266
    %v268 = vperm.slane %v79, 2
    %v269 = vmul.f32 %v225, %v268
    %v270 = vmul.f32 %v231, %v268
    %v271 = vmul.f32 %v237, %v268
    %v272 = vmul.f32 %v243, %v268
    %v273 = vmul.f32 %v249, %v268
    %v274 = vmul.f32 %v255, %v268
    %v275 = vmul.f32 %v261, %v268
    %v276 = vmul.f32 %v267, %v268
    %v277 = vadd.f32 %v204, %v269
    %v278 = vadd.f32 %v205, %v270
    %v279 = vadd.f32 %v206, %v271
    %v280 = vadd.f32 %v207, %v272
    %v281 = vadd.f32 %v208, %v273
    %v282 = vadd.f32 %v209, %v274
    %v283 = vadd.f32 %v210, %v275
    %v284 = vadd.f32 %v211, %v276
    %v285 = vmul.f32 %v225, %v195
    %v286 = vmul.f32 %v231, %v195
    %v287 = vmul.f32 %v237, %v195
    %v288 = vmul.f32 %v243, %v195
    %v289 = vmul.f32 %v249, %v195
    %v290 = vmul.f32 %v255, %v195
    %v291 = vmul.f32 %v261, %v195
    %v292 = vmul.f32 %v267, %v195
    %v293 = vadd.f32 %v212, %v285
    %v294 = vadd.f32 %v213, %v286
    %v295 = vadd.f32 %v214, %v287
    %v296 = vadd.f32 %v215, %v288
    %v297 = vadd.f32 %v216, %v289
    %v298 = vadd.f32 %v217, %v290
    %v299 = vadd.f32 %v218, %v291
    %v300 = vadd.f32 %v219, %v292
    %v301 = vlaneseq
    %v302 = vshrl.u32 %v301, 7
    %v303 = vadd.s32 %v302, 12
    %304 = vset.pattern.permute.xlu0 %v303
    %305 = vperm.xlu0 %304, %v82
    %v306 = vpop.permute.xlu0 %305
    %v307 = vlaneseq
    %v308 = vshrl.u32 %v307, 7
    %v309 = vadd.s32 %v308, 12
    %310 = vset.pattern.permute.xlu0 %v309
    %311 = vperm.xlu0 %310, %v89
    %v312 = vpop.permute.xlu0 %311
    %v313 = vlaneseq
    %v314 = vshrl.u32 %v313, 7
    %v315 = vadd.s32 %v314, 12
    %316 = vset.pattern.permute.xlu0 %v315
    %317 = vperm.xlu0 %316, %v96
    %v318 = vpop.permute.xlu0 %317
    %v319 = vlaneseq
    %v320 = vshrl.u32 %v319, 7
    %v321 = vadd.s32 %v320, 12
    %322 = vset.pattern.permute.xlu0 %v321
    %323 = vperm.xlu0 %322, %v103
    %v324 = vpop.permute.xlu0 %323
    %v325 = vlaneseq
    %v326 = vshrl.u32 %v325, 7
    %v327 = vadd.s32 %v326, 12
    %328 = vset.pattern.permute.xlu0 %v327
    %329 = vperm.xlu0 %328, %v110
    %v330 = vpop.permute.xlu0 %329
    %v331 = vlaneseq
    %v332 = vshrl.u32 %v331, 7
    %v333 = vadd.s32 %v332, 12
    %334 = vset.pattern.permute.xlu0 %v333
    %335 = vperm.xlu0 %334, %v117
    %v336 = vpop.permute.xlu0 %335
    %v337 = vlaneseq
    %v338 = vshrl.u32 %v337, 7
    %v339 = vadd.s32 %v338, 12
    %340 = vset.pattern.permute.xlu0 %v339
    %341 = vperm.xlu0 %340, %v124
    %v342 = vpop.permute.xlu0 %341
    %v343 = vlaneseq
    %v344 = vshrl.u32 %v343, 7
    %v345 = vadd.s32 %v344, 12
    %346 = vset.pattern.permute.xlu0 %v345
    %347 = vperm.xlu0 %346, %v131
    %v348 = vpop.permute.xlu0 %347
    %v349 = vperm.slane %v79, 3
    %v350 = vmul.f32 %v306, %v349
    %v351 = vmul.f32 %v312, %v349
    %v352 = vmul.f32 %v318, %v349
    %v353 = vmul.f32 %v324, %v349
    %v354 = vmul.f32 %v330, %v349
    %v355 = vmul.f32 %v336, %v349
    %v356 = vmul.f32 %v342, %v349
    %v357 = vmul.f32 %v348, %v349
    %v358 = vadd.f32 %v277, %v350
    %v359 = vadd.f32 %v278, %v351
    %v360 = vadd.f32 %v279, %v352
    %v361 = vadd.f32 %v280, %v353
    %v362 = vadd.f32 %v281, %v354
    %v363 = vadd.f32 %v282, %v355
    %v364 = vadd.f32 %v283, %v356
    %v365 = vadd.f32 %v284, %v357
    %v366 = vmul.f32 %v306, %v268
    %v367 = vmul.f32 %v312, %v268
    %v368 = vmul.f32 %v318, %v268
    %v369 = vmul.f32 %v324, %v268
    %v370 = vmul.f32 %v330, %v268
    %v371 = vmul.f32 %v336, %v268
    %v372 = vmul.f32 %v342, %v268
    %v373 = vmul.f32 %v348, %v268
    %v374 = vadd.f32 %v293, %v366
    %v375 = vadd.f32 %v294, %v367
    %v376 = vadd.f32 %v295, %v368
    %v377 = vadd.f32 %v296, %v369
    %v378 = vadd.f32 %v297, %v370
    %v379 = vadd.f32 %v298, %v371
    %v380 = vadd.f32 %v299, %v372
    %v381 = vadd.f32 %v300, %v373
    %v382 = vlaneseq
    %v383 = vshrl.u32 %v382, 7
    %v384 = vadd.s32 %v383, 2
    %385 = vset.pattern.permute.xlu0 %v384
    %386 = vperm.xlu0 %385, %v82
    %v387 = vpop.permute.xlu0 %386
    %v388 = vlaneseq
    %v389 = vshrl.u32 %v388, 7
    %v390 = vadd.s32 %v389, 2
    %391 = vset.pattern.permute.xlu0 %v390
    %392 = vperm.xlu0 %391, %v89
    %v393 = vpop.permute.xlu0 %392
    %v394 = vlaneseq
    %v395 = vshrl.u32 %v394, 7
    %v396 = vadd.s32 %v395, 2
    %397 = vset.pattern.permute.xlu0 %v396
    %398 = vperm.xlu0 %397, %v96
    %v399 = vpop.permute.xlu0 %398
    %v400 = vlaneseq
    %v401 = vshrl.u32 %v400, 7
    %v402 = vadd.s32 %v401, 2
    %403 = vset.pattern.permute.xlu0 %v402
    %404 = vperm.xlu0 %403, %v103
    %v405 = vpop.permute.xlu0 %404
    %v406 = vlaneseq
    %v407 = vshrl.u32 %v406, 7
    %v408 = vadd.s32 %v407, 2
    %409 = vset.pattern.permute.xlu0 %v408
    %410 = vperm.xlu0 %409, %v110
    %v411 = vpop.permute.xlu0 %410
    %v412 = vlaneseq
    %v413 = vshrl.u32 %v412, 7
    %v414 = vadd.s32 %v413, 2
    %415 = vset.pattern.permute.xlu0 %v414
    %416 = vperm.xlu0 %415, %v117
    %v417 = vpop.permute.xlu0 %416
    %v418 = vlaneseq
    %v419 = vshrl.u32 %v418, 7
    %v420 = vadd.s32 %v419, 2
    %421 = vset.pattern.permute.xlu0 %v420
    %422 = vperm.xlu0 %421, %v124
    %v423 = vpop.permute.xlu0 %422
    %v424 = vlaneseq
    %v425 = vshrl.u32 %v424, 7
    %v426 = vadd.s32 %v425, 2
    %427 = vset.pattern.permute.xlu0 %v426
    %428 = vperm.xlu0 %427, %v131
    %v429 = vpop.permute.xlu0 %428
    %v430 = vperm.slane %v79, 4
    %v431 = vmul.f32 %v387, %v430
    %v432 = vmul.f32 %v393, %v430
    %v433 = vmul.f32 %v399, %v430
    %v434 = vmul.f32 %v405, %v430
    %v435 = vmul.f32 %v411, %v430
    %v436 = vmul.f32 %v417, %v430
    %v437 = vmul.f32 %v423, %v430
    %v438 = vmul.f32 %v429, %v430
    %v439 = vadd.f32 %v358, %v431
    %v440 = vadd.f32 %v359, %v432
    %v441 = vadd.f32 %v360, %v433
    %v442 = vadd.f32 %v361, %v434
    %v443 = vadd.f32 %v362, %v435
    %v444 = vadd.f32 %v363, %v436
    %v445 = vadd.f32 %v364, %v437
    %v446 = vadd.f32 %v365, %v438
    %v447 = vmul.f32 %v387, %v349
    %v448 = vmul.f32 %v393, %v349
    %v449 = vmul.f32 %v399, %v349
    %v450 = vmul.f32 %v405, %v349
    %v451 = vmul.f32 %v411, %v349
    %v452 = vmul.f32 %v417, %v349
    %v453 = vmul.f32 %v423, %v349
    %v454 = vmul.f32 %v429, %v349
    %v455 = vadd.f32 %v374, %v447
    %v456 = vadd.f32 %v375, %v448
    %v457 = vadd.f32 %v376, %v449
    %v458 = vadd.f32 %v377, %v450
    %v459 = vadd.f32 %v378, %v451
    %v460 = vadd.f32 %v379, %v452
    %v461 = vadd.f32 %v380, %v453
    %v462 = vadd.f32 %v381, %v454
    %v463 = vlaneseq
    %v464 = vshrl.u32 %v463, 7
    %v465 = vadd.s32 %v464, 13
    %466 = vset.pattern.permute.xlu0 %v465
    %467 = vperm.xlu0 %466, %v82
    %v468 = vpop.permute.xlu0 %467
    %v469 = vlaneseq
    %v470 = vshrl.u32 %v469, 7
    %v471 = vadd.s32 %v470, 13
    %472 = vset.pattern.permute.xlu0 %v471
    %473 = vperm.xlu0 %472, %v89
    %v474 = vpop.permute.xlu0 %473
    %v475 = vlaneseq
    %v476 = vshrl.u32 %v475, 7
    %v477 = vadd.s32 %v476, 13
    %478 = vset.pattern.permute.xlu0 %v477
    %479 = vperm.xlu0 %478, %v96
    %v480 = vpop.permute.xlu0 %479
    %v481 = vlaneseq
    %v482 = vshrl.u32 %v481, 7
    %v483 = vadd.s32 %v482, 13
    %484 = vset.pattern.permute.xlu0 %v483
    %485 = vperm.xlu0 %484, %v103
    %v486 = vpop.permute.xlu0 %485
    %v487 = vlaneseq
    %v488 = vshrl.u32 %v487, 7
    %v489 = vadd.s32 %v488, 13
    %490 = vset.pattern.permute.xlu0 %v489
    %491 = vperm.xlu0 %490, %v110
    %v492 = vpop.permute.xlu0 %491
    %v493 = vlaneseq
    %v494 = vshrl.u32 %v493, 7
    %v495 = vadd.s32 %v494, 13
    %496 = vset.pattern.permute.xlu0 %v495
    %497 = vperm.xlu0 %496, %v117
    %v498 = vpop.permute.xlu0 %497
    %v499 = vlaneseq
    %v500 = vshrl.u32 %v499, 7
    %v501 = vadd.s32 %v500, 13
    %502 = vset.pattern.permute.xlu0 %v501
    %503 = vperm.xlu0 %502, %v124
    %v504 = vpop.permute.xlu0 %503
    %v505 = vlaneseq
    %v506 = vshrl.u32 %v505, 7
    %v507 = vadd.s32 %v506, 13
    %508 = vset.pattern.permute.xlu0 %v507
    %509 = vperm.xlu0 %508, %v131
    %v510 = vpop.permute.xlu0 %509
    %v511 = vperm.slane %v79, 5
    %v512 = vmul.f32 %v468, %v511
    %v513 = vmul.f32 %v474, %v511
    %v514 = vmul.f32 %v480, %v511
    %v515 = vmul.f32 %v486, %v511
    %v516 = vmul.f32 %v492, %v511
    %v517 = vmul.f32 %v498, %v511
    %v518 = vmul.f32 %v504, %v511
    %v519 = vmul.f32 %v510, %v511
    %v520 = vadd.f32 %v439, %v512
    %v521 = vadd.f32 %v440, %v513
    %v522 = vadd.f32 %v441, %v514
    %v523 = vadd.f32 %v442, %v515
    %v524 = vadd.f32 %v443, %v516
    %v525 = vadd.f32 %v444, %v517
    %v526 = vadd.f32 %v445, %v518
    %v527 = vadd.f32 %v446, %v519
    %v528 = vmul.f32 %v468, %v430
    %v529 = vmul.f32 %v474, %v430
    %v530 = vmul.f32 %v480, %v430
    %v531 = vmul.f32 %v486, %v430
    %v532 = vmul.f32 %v492, %v430
    %v533 = vmul.f32 %v498, %v430
    %v534 = vmul.f32 %v504, %v430
    %v535 = vmul.f32 %v510, %v430
    %v536 = vadd.f32 %v455, %v528
    %v537 = vadd.f32 %v456, %v529
    %v538 = vadd.f32 %v457, %v530
    %v539 = vadd.f32 %v458, %v531
    %v540 = vadd.f32 %v459, %v532
    %v541 = vadd.f32 %v460, %v533
    %v542 = vadd.f32 %v461, %v534
    %v543 = vadd.f32 %v462, %v535
    %v544 = vlaneseq
    %v545 = vshrl.u32 %v544, 7
    %v546 = vadd.s32 %v545, 3
    %547 = vset.pattern.permute.xlu0 %v546
    %548 = vperm.xlu0 %547, %v82
    %v549 = vpop.permute.xlu0 %548
    %v550 = vlaneseq
    %v551 = vshrl.u32 %v550, 7
    %v552 = vadd.s32 %v551, 3
    %553 = vset.pattern.permute.xlu0 %v552
    %554 = vperm.xlu0 %553, %v89
    %v555 = vpop.permute.xlu0 %554
    %v556 = vlaneseq
    %v557 = vshrl.u32 %v556, 7
    %v558 = vadd.s32 %v557, 3
    %559 = vset.pattern.permute.xlu0 %v558
    %560 = vperm.xlu0 %559, %v96
    %v561 = vpop.permute.xlu0 %560
    %v562 = vlaneseq
    %v563 = vshrl.u32 %v562, 7
    %v564 = vadd.s32 %v563, 3
    %565 = vset.pattern.permute.xlu0 %v564
    %566 = vperm.xlu0 %565, %v103
    %v567 = vpop.permute.xlu0 %566
    %v568 = vlaneseq
    %v569 = vshrl.u32 %v568, 7
    %v570 = vadd.s32 %v569, 3
    %571 = vset.pattern.permute.xlu0 %v570
    %572 = vperm.xlu0 %571, %v110
    %v573 = vpop.permute.xlu0 %572
    %v574 = vlaneseq
    %v575 = vshrl.u32 %v574, 7
    %v576 = vadd.s32 %v575, 3
    %577 = vset.pattern.permute.xlu0 %v576
    %578 = vperm.xlu0 %577, %v117
    %v579 = vpop.permute.xlu0 %578
    %v580 = vlaneseq
    %v581 = vshrl.u32 %v580, 7
    %v582 = vadd.s32 %v581, 3
    %583 = vset.pattern.permute.xlu0 %v582
    %584 = vperm.xlu0 %583, %v124
    %v585 = vpop.permute.xlu0 %584
    %v586 = vlaneseq
    %v587 = vshrl.u32 %v586, 7
    %v588 = vadd.s32 %v587, 3
    %589 = vset.pattern.permute.xlu0 %v588
    %590 = vperm.xlu0 %589, %v131
    %v591 = vpop.permute.xlu0 %590
    %v592 = vperm.slane %v79, 6
    %v593 = vmul.f32 %v549, %v592
    %v594 = vmul.f32 %v555, %v592
    %v595 = vmul.f32 %v561, %v592
    %v596 = vmul.f32 %v567, %v592
    %v597 = vmul.f32 %v573, %v592
    %v598 = vmul.f32 %v579, %v592
    %v599 = vmul.f32 %v585, %v592
    %v600 = vmul.f32 %v591, %v592
    %v601 = vadd.f32 %v520, %v593
    %v602 = vadd.f32 %v521, %v594
    %v603 = vadd.f32 %v522, %v595
    %v604 = vadd.f32 %v523, %v596
    %v605 = vadd.f32 %v524, %v597
    %v606 = vadd.f32 %v525, %v598
    %v607 = vadd.f32 %v526, %v599
    %v608 = vadd.f32 %v527, %v600
    %v609 = vmul.f32 %v549, %v511
    %v610 = vmul.f32 %v555, %v511
    %v611 = vmul.f32 %v561, %v511
    %v612 = vmul.f32 %v567, %v511
    %v613 = vmul.f32 %v573, %v511
    %v614 = vmul.f32 %v579, %v511
    %v615 = vmul.f32 %v585, %v511
    %v616 = vmul.f32 %v591, %v511
    %v617 = vadd.f32 %v536, %v609
    %v618 = vadd.f32 %v537, %v610
    %v619 = vadd.f32 %v538, %v611
    %v620 = vadd.f32 %v539, %v612
    %v621 = vadd.f32 %v540, %v613
    %v622 = vadd.f32 %v541, %v614
    %v623 = vadd.f32 %v542, %v615
    %v624 = vadd.f32 %v543, %v616
    %v625 = vlaneseq
    %v626 = vshrl.u32 %v625, 7
    %v627 = vadd.s32 %v626, 14
    %628 = vset.pattern.permute.xlu0 %v627
    %629 = vperm.xlu0 %628, %v82
    %v630 = vpop.permute.xlu0 %629
    %v631 = vlaneseq
    %v632 = vshrl.u32 %v631, 7
    %v633 = vadd.s32 %v632, 14
    %634 = vset.pattern.permute.xlu0 %v633
    %635 = vperm.xlu0 %634, %v89
    %v636 = vpop.permute.xlu0 %635
    %v637 = vlaneseq
    %v638 = vshrl.u32 %v637, 7
    %v639 = vadd.s32 %v638, 14
    %640 = vset.pattern.permute.xlu0 %v639
    %641 = vperm.xlu0 %640, %v96
    %v642 = vpop.permute.xlu0 %641
    %v643 = vlaneseq
    %v644 = vshrl.u32 %v643, 7
    %v645 = vadd.s32 %v644, 14
    %646 = vset.pattern.permute.xlu0 %v645
    %647 = vperm.xlu0 %646, %v103
    %v648 = vpop.permute.xlu0 %647
    %v649 = vlaneseq
    %v650 = vshrl.u32 %v649, 7
    %v651 = vadd.s32 %v650, 14
    %652 = vset.pattern.permute.xlu0 %v651
    %653 = vperm.xlu0 %652, %v110
    %v654 = vpop.permute.xlu0 %653
    %v655 = vlaneseq
    %v656 = vshrl.u32 %v655, 7
    %v657 = vadd.s32 %v656, 14
    %658 = vset.pattern.permute.xlu0 %v657
    %659 = vperm.xlu0 %658, %v117
    %v660 = vpop.permute.xlu0 %659
    %v661 = vlaneseq
    %v662 = vshrl.u32 %v661, 7
    %v663 = vadd.s32 %v662, 14
    %664 = vset.pattern.permute.xlu0 %v663
    %665 = vperm.xlu0 %664, %v124
    %v666 = vpop.permute.xlu0 %665
    %v667 = vlaneseq
    %v668 = vshrl.u32 %v667, 7
    %v669 = vadd.s32 %v668, 14
    %670 = vset.pattern.permute.xlu0 %v669
    %671 = vperm.xlu0 %670, %v131
    %v672 = vpop.permute.xlu0 %671
    %v673 = vmul.f32 %v630, %v592
    %v674 = vmul.f32 %v636, %v592
    %v675 = vmul.f32 %v642, %v592
    %v676 = vmul.f32 %v648, %v592
    %v677 = vmul.f32 %v654, %v592
    %v678 = vmul.f32 %v660, %v592
    %v679 = vmul.f32 %v666, %v592
    %v680 = vmul.f32 %v672, %v592
    %v681 = vadd.f32 %v617, %v673
    %v682 = vadd.f32 %v618, %v674
    %v683 = vadd.f32 %v619, %v675
    %v684 = vadd.f32 %v620, %v676
    %v685 = vadd.f32 %v621, %v677
    %v686 = vadd.f32 %v622, %v678
    %v687 = vadd.f32 %v623, %v679
    %v688 = vadd.f32 %v624, %v680
    %v689 = vmax.f32 %v601, %v681
    %v690 = vmax.f32 %v602, %v682
    %v691 = vmax.f32 %v603, %v683
    %v692 = vmax.f32 %v604, %v684
    %v693 = vmax.f32 %v605, %v685
    %v694 = vmax.f32 %v606, %v686
    %v695 = vmax.f32 %v607, %v687
    %v696 = vmax.f32 %v608, %v688
    %v697 = vperm.slane %v79, 7
    %v698 = vadd.f32 %v689, %v697
    %v699 = vadd.f32 %v690, %v697
    %v700 = vadd.f32 %v691, %v697
    %v701 = vadd.f32 %v692, %v697
    %v702 = vadd.f32 %v693, %v697
    %v703 = vadd.f32 %v694, %v697
    %v704 = vadd.f32 %v695, %v697
    %v705 = vadd.f32 %v696, %v697
    %v706 = vmax.f32 %v698, 0.0
    %v707 = vmax.f32 %v699, 0.0
    %v708 = vmax.f32 %v700, 0.0
    %v709 = vmax.f32 %v701, 0.0
    %v710 = vmax.f32 %v702, 0.0
    %v711 = vmax.f32 %v703, 0.0
    %v712 = vmax.f32 %v704, 0.0
    %v713 = vmax.f32 %v705, 0.0
    %v714 = vrot.slane %v706, 4
    %v715 = vadd.f32 %v706, %v714
    %v716 = vrot.slane %v715, 2
    %v717 = vadd.f32 %v715, %v716
    %v718 = vrot.slane %v717, 1
    %v719 = vadd.f32 %v717, %v718
    %v720 = vrot.slane %v707, 4
    %v721 = vadd.f32 %v707, %v720
    %v722 = vrot.slane %v721, 2
    %v723 = vadd.f32 %v721, %v722
    %v724 = vrot.slane %v723, 1
    %v725 = vadd.f32 %v723, %v724
    %v726 = vrot.slane %v708, 4
    %v727 = vadd.f32 %v708, %v726
    %v728 = vrot.slane %v727, 2
    %v729 = vadd.f32 %v727, %v728
    %v730 = vrot.slane %v729, 1
    %v731 = vadd.f32 %v729, %v730
    %v732 = vrot.slane %v709, 4
    %v733 = vadd.f32 %v709, %v732
    %v734 = vrot.slane %v733, 2
    %v735 = vadd.f32 %v733, %v734
    %v736 = vrot.slane %v735, 1
    %v737 = vadd.f32 %v735, %v736
    %v738 = vrot.slane %v710, 4
    %v739 = vadd.f32 %v710, %v738
    %v740 = vrot.slane %v739, 2
    %v741 = vadd.f32 %v739, %v740
    %v742 = vrot.slane %v741, 1
    %v743 = vadd.f32 %v741, %v742
    %v744 = vrot.slane %v711, 4
    %v745 = vadd.f32 %v711, %v744
    %v746 = vrot.slane %v745, 2
    %v747 = vadd.f32 %v745, %v746
    %v748 = vrot.slane %v747, 1
    %v749 = vadd.f32 %v747, %v748
    %v750 = vrot.slane %v712, 4
    %v751 = vadd.f32 %v712, %v750
    %v752 = vrot.slane %v751, 2
    %v753 = vadd.f32 %v751, %v752
    %v754 = vrot.slane %v753, 1
    %v755 = vadd.f32 %v753, %v754
    %v756 = vrot.slane %v713, 4
    %v757 = vadd.f32 %v713, %v756
    %v758 = vrot.slane %v757, 2
    %v759 = vadd.f32 %v757, %v758
    %v760 = vrot.slane %v759, 1
    %v761 = vadd.f32 %v759, %v760
    %v762 = vld [vmem:[#allocation7] sm:$0xff]
    %v763 = vld [vmem:[#allocation7 + $0x8] sm:$0xff]
    %v764 = vld [vmem:[#allocation7 + $0x10] sm:$0xff]
    %v765 = vld [vmem:[#allocation7 + $0x18] sm:$0xff]
    %v766 = vld [vmem:[#allocation7 + $0x20] sm:$0xff]
    %v767 = vld [vmem:[#allocation7 + $0x28] sm:$0xff]
    %v768 = vld [vmem:[#allocation7 + $0x30] sm:$0xff]
    %v769 = vld [vmem:[#allocation7 + $0x38] sm:$0xff]
    %v770 = vld [vmem:[#allocation7 + $0x40] sm:$0xff]
    %v771 = vld [vmem:[#allocation7 + $0x48] sm:$0xff]
    %v772 = vld [vmem:[#allocation7 + $0x50] sm:$0xff]
    %v773 = vld [vmem:[#allocation7 + $0x58] sm:$0xff]
    %v774 = vld [vmem:[#allocation7 + $0x60] sm:$0xff]
    %v775 = vld [vmem:[#allocation7 + $0x68] sm:$0xff]
    %v776 = vld [vmem:[#allocation7 + $0x70] sm:$0xff]
    %v777 = vld [vmem:[#allocation7 + $0x78] sm:$0xff]
    %v778 = vld [vmem:[#allocation8] sm:$0xff]
    %v779 = vld [vmem:[#allocation8 + $0x8] sm:$0xff]
    %v780 = vld [vmem:[#allocation8 + $0x10] sm:$0xff]
    %v781 = vld [vmem:[#allocation8 + $0x18] sm:$0xff]
    %v782 = vld [vmem:[#allocation8 + $0x20] sm:$0xff]
    %v783 = vld [vmem:[#allocation8 + $0x28] sm:$0xff]
    %v784 = vld [vmem:[#allocation8 + $0x30] sm:$0xff]
    %v785 = vld [vmem:[#allocation8 + $0x38] sm:$0xff]
    %v786 = vld [vmem:[#allocation8 + $0x40] sm:$0xff]
    %v787 = vld [vmem:[#allocation8 + $0x48] sm:$0xff]
    %v788 = vld [vmem:[#allocation8 + $0x50] sm:$0xff]
    %v789 = vld [vmem:[#allocation8 + $0x58] sm:$0xff]
    %v790 = vld [vmem:[#allocation8 + $0x60] sm:$0xff]
    %v791 = vld [vmem:[#allocation8 + $0x68] sm:$0xff]
    %v792 = vld [vmem:[#allocation8 + $0x70] sm:$0xff]
    %v793 = vld [vmem:[#allocation8 + $0x78] sm:$0xff]
    %794 = vmatpush.msra.mxu0 %v793
    %795 = vmatpush.msra.mxu0 %v792
    %796 = vmatpush.msra.mxu0 %v791
    %797 = vmatpush.msra.mxu0 %v790
    %798 = vmatpush.msra.mxu0 %v789
    %799 = vmatpush.msra.mxu0 %v788
    %800 = vmatpush.msra.mxu0 %v787
    %801 = vmatpush.msra.mxu0 %v786
    %802 = vmatpush.msra.mxu0 %v785
    %803 = vmatpush.msra.mxu0 %v784
    %804 = vmatpush.msra.mxu0 %v783
    %805 = vmatpush.msra.mxu0 %v782
    %806 = vmatpush.msra.mxu0 %v781
    %807 = vmatpush.msra.mxu0 %v780
    %808 = vmatpush.msra.mxu0 %v779
    %809 = vmatpush.msra.mxu0 %v778
    %810 = vmatmul.f32.gmra.mxu0 %v81
    %v811 = vpop.f32.mrf.mxu0
    %v812 = vadd.f32 0.0, %v811
    %813 = vdwg.mxu0
    %vm822 = vcmask 1041409
    %v823 = vsel %vm822, %v725, %v719
    %vm824 = vcmask 1042434
    %v825 = vsel %vm824, %v731, %v823
    %vm826 = vcmask 1043459
    %v827 = vsel %vm826, %v737, %v825
    %vm828 = vcmask 1044484
    %v829 = vsel %vm828, %v743, %v827
    %vm830 = vcmask 1045509
    %v831 = vsel %vm830, %v749, %v829
    %vm832 = vcmask 1046534
    %v833 = vsel %vm832, %v755, %v831
    %vm834 = vcmask 1047559
    %v835 = vsel %vm834, %v761, %v833
    %837 = vmatpush.msra.mxu0 %v777
    %838 = vmatpush.msra.mxu0 %v776
    %839 = vmatpush.msra.mxu0 %v775
    %840 = vmatpush.msra.mxu0 %v774
    %841 = vmatpush.msra.mxu0 %v773
    %842 = vmatpush.msra.mxu0 %v772
    %843 = vmatpush.msra.mxu0 %v771
    %844 = vmatpush.msra.mxu0 %v770
    %845 = vmatpush.msra.mxu0 %v769
    %846 = vmatpush.msra.mxu0 %v768
    %847 = vmatpush.msra.mxu0 %v767
    %848 = vmatpush.msra.mxu0 %v766
    %849 = vmatpush.msra.mxu0 %v765
    %850 = vmatpush.msra.mxu0 %v764
    %851 = vmatpush.msra.mxu0 %v763
    %852 = vmatpush.msra.mxu0 %v762
    %853 = vmatmul.f32.gmra.mxu0 %v835
    %v854 = vpop.f32.mrf.mxu0
    %v855 = vadd.f32 %v812, %v854
    %856 = vdwg.mxu0
    %v857 = vperm.slane %v80, 0
    %v858 = vadd.f32 %v855, %v857
    %859 = vst [vmem:[#allocation10] sm:$0xff] %v858
    // Predicated region
    $region34: #{tpu_custom_call.1} parent=1 // pred_check
      _
    $region35: #{tpu_custom_call.1} parent=1 // pred_check_branch
      %861 = sbr.rel (0) target = $region37
    $region36: #{tpu_custom_call.1} parent=1 // pred_region
      %863 = vsyncadd [#allocation4], 0
      %s865 = sshll.u32 [#allocation10], 4
      %s866 = int_to_ptr.vmem [resolvable:$true] %s865
      %s867 = sshll.u32 %s4, 4
      %s868 = int_to_ptr.hbm [resolvable:$true] %s867
      %870 = dma.vmem_to_hbm [thread:$0]  %s866, 128, %s868, [#allocation4]
    $region37: #{tpu_custom_call.1} parent=1 // pred_fallthru
      _
    // Predicated region
    $region38: #{tpu_custom_call.1} parent=1 // pred_check
      _
    $region39: #{tpu_custom_call.1} parent=1 // pred_check_branch
      %872 = sbr.rel (0) target = $region41
    $region40: #{tpu_custom_call.1} parent=1 // pred_region
      %874 = dma.done [#allocation4], 128
    $region41: #{tpu_custom_call.1} parent=1 // pred_fallthru
      _
    %875 = vsyncpa [#allocation3], 1
    %876 = vsyncpa [#allocation6], 1
    %877 = vsyncpa [#allocation9], 1
    %878 = vsyncpa [#allocation4], 1

</llo_original>
